<compile_context>
chip_gen: v6e
topology: v6e:2x2x1
jax: 0.10.0
libtpu: 0.0.40
codegen_flags: <defaults>
</compile_context>

<pallas_src>
import jax
import jax.numpy as jnp
from jax import lax
from jax.experimental import pallas as pl
from jax.experimental.pallas import tpu as pltpu

_INFLIGHT = 32                          # outstanding row DMAs (semaphore ring depth)
_ISSUE_UNROLL = 8                       # unroll of the steady-state wait/start loop
_TM_MAX = 1024                          # hard cap on tokens per grid step
_TILE_VMEM_BUDGET = 8 * 1024 * 1024     # budget for the double-buffered (tm, D) tile
_FAST_PATH_MAX_V = 1024                 # one-hot fast path only below this vocab
_FAST_PATH_MAX_TABLE_BYTES = 4 * 1024 * 1024
_VMEM_LIMIT = 32 * 1024 * 1024          # <= scoped/physical VMEM on v5e/v6e/v7x


def _embed_gather_dma_kernel(ids_ref, emb_hbm, out_ref, sem):
    """Gather tm embedding rows from the HBM table into the (tm, D) out tile.

    ids_ref : (n_pad,) int32 in SMEM (scalar-prefetched, pre-clamped in wrapper)
    emb_hbm : (V, D) embedding table, left in HBM (memory_space=pl.ANY)
    out_ref : (tm, D) VMEM output tile
    sem     : (_INFLIGHT,) DMA semaphore ring
    """
    tm = out_ref.shape[0]
    base = pl.program_id(0) * tm
    n_prime = min(_INFLIGHT, tm)

    def start(k):
        tok = ids_ref[base + k]              # pre-clamped -> never an OOB DMA source
        pltpu.make_async_copy(emb_hbm.at[tok], out_ref.at[k],
                              sem.at[k % _INFLIGHT]).start()

    def wait(k):
        # Shape-only wait: the wait amount depends only on the copied shape, so
        # use constant row indices (no SMEM re-read / re-clamp after the wait).
        pltpu.make_async_copy(emb_hbm.at[0], out_ref.at[0],
                              sem.at[k % _INFLIGHT]).wait()

    # Prime the ring with up to _INFLIGHT outstanding row gathers (static unroll).
    for k in range(n_prime):
        start(k)

    # Steady state: retire the oldest copy holding a slot, immediately reuse the
    # slot for the row _INFLIGHT further ahead.  Unrolled so several descriptors
    # are issued per loop body (descriptor issue is scalar-bound).
    if tm > n_prime:
        def body(j, carry):
            wait(j)
            start(j + n_prime)
            return carry
        lax.fori_loop(0, tm - n_prime, body, 0, unroll=_ISSUE_UNROLL)

    # Drain the tail (static unroll) so every row has landed before the tile's
    # writeback DMA.
    for k in range(n_prime):
        wait(tm - n_prime + k)


def _embed_onehot_kernel(ids_ref, table_ref, out_ref):
    """Small-vocab path: out = onehot(ids) @ table with the table VMEM-resident.

    ids_ref   : (tm, 1) int32 VMEM block
    table_ref : (V, D) table, VMEM-resident across the whole grid
    out_ref   : (tm, D) output tile
    """
    v = table_ref.shape[0]
    ids = ids_ref[...]                                             # (tm, 1)
    iota = lax.broadcasted_iota(jnp.int32, (ids.shape[0], v), 1)   # (tm, V)
    onehot = (ids == iota).astype(table_ref.dtype)
    out_ref[...] = jnp.dot(onehot, table_ref[...],
                           preferred_element_type=jnp.float32).astype(out_ref.dtype)


def token_embedding(x, emb_table, *, tm=None):
    """x: (B, T) int token ids; emb_table: (V, D) -> (B, T, D)."""
    B, T = x.shape
    V, D = emb_table.shape
    N = B * T
    itemsize = jnp.dtype(emb_table.dtype).itemsize

    # TODO(synk): nn.Embedding raises on out-of-range ids; we clamp instead
    # (vectorized, once) which also guarantees no OOB DMA source address.
    ids = jnp.clip(x.reshape(N).astype(jnp.int32), 0, V - 1)

    # Token-tile size: largest multiple of 8 whose double-buffered (tm, D) output
    # tile stays within the budget -> tm=1024 for typical D on v5e/v6e, and
    # automatically capped for large D so it also fits v7x's smaller 64 MiB VMEM.
    if tm is None:
        tm = _TILE_VMEM_BUDGET // (2 * D * itemsize)
        tm = max(8, min(_TM_MAX, (tm // 8) * 8))
    tm = int(min(tm, N))
    if tm < N:
        tm = max(8, (tm // 8) * 8)          # (8, 128) sublane constraint on the block

    n_tiles = pl.cdiv(N, tm)
    n_pad = n_tiles * tm
    if n_pad != N:
        # Only the tiny ids array is padded (padded ids gather row 0 into rows the
        # boundary output block never writes back); the output itself is emitted
        # at its exact (N, D) shape -> no post-kernel slice/copy.
        ids = jnp.pad(ids, (0, n_pad - N))

    compiler_params = pltpu.CompilerParams(
        dimension_semantics=("parallel",),   # independent token tiles (megacore)
        vmem_limit_bytes=_VMEM_LIMIT,
    )

    use_fast_path = (V <= _FAST_PATH_MAX_V
                     and V * D * itemsize <= _FAST_PATH_MAX_TABLE_BYTES)

    if use_fast_path:
        cost = pl.CostEstimate(
            flops=2 * n_pad * V * D, transcendentals=0,
            bytes_accessed=V * D * itemsize + N * D * itemsize + N * 4)
        out = pl.pallas_call(
            _embed_onehot_kernel,
            out_shape=jax.ShapeDtypeStruct((N, D), emb_table.dtype),
            grid=(n_tiles,),
            in_specs=[pl.BlockSpec((tm, 1), lambda i: (i, 0)),
                      pl.BlockSpec((V, D), lambda i: (0, 0))],    # VMEM-resident table
            out_specs=pl.BlockSpec((tm, D), lambda i: (i, 0)),
            compiler_params=compiler_params,
            cost_estimate=cost,
        )(ids.reshape(n_pad, 1), emb_table)
    else:
        # TODO(synk): for sub-32-bit tables (bf16/fp8), bitcast table+output to
        # uint32 lanes around this call so each row DMA is a full-lane store.
        # TODO(synk): beyond ~100K tokens the scalar-prefetched ids overflow SMEM;
        # switch ids to per-tile SMEM BlockSpec blocks at that point.
        cost = pl.CostEstimate(
            flops=0, transcendentals=0,
            bytes_accessed=2 * N * D * itemsize + N * 4)
        out = pl.pallas_call(
            _embed_gather_dma_kernel,
            out_shape=jax.ShapeDtypeStruct((N, D), emb_table.dtype),
            grid_spec=pltpu.PrefetchScalarGridSpec(
                num_scalar_prefetch=1,                            # ids -> SMEM
                grid=(n_tiles,),
                in_specs=[pl.BlockSpec(memory_space=pl.ANY)],     # table stays in HBM
                out_specs=pl.BlockSpec((tm, D), lambda i, ids: (i, 0)),
                scratch_shapes=[pltpu.SemaphoreType.DMA((_INFLIGHT,))],
            ),
            compiler_params=compiler_params,
            cost_estimate=cost,
        )(ids, emb_table)

    return out.reshape(B, T, D)


if __name__ == "__main__":
    key = jax.random.PRNGKey(0)
    k_emb, k_ids, k_emb2, k_ids2 = jax.random.split(key, 4)

    # Case 1: small shapes from the module spec (exercises the VMEM-resident
    # one-hot fast path): (B, T) -> (B, T, model_dim).
    B, T = 2, 8
    vocab_size, model_dim = 64, 32
    emb_table = jax.random.normal(k_emb, (vocab_size, model_dim), dtype=jnp.float32)
    x = jax.random.randint(k_ids, (B, T), 0, vocab_size, dtype=jnp.int32)

    out = jax.block_until_ready(token_embedding(x, emb_table))
    ref = jnp.take(emb_table, x, axis=0)
    assert out.shape == (B, T, model_dim)
    assert jnp.allclose(out, ref), "fast path mismatch vs. reference lookup"

    # Case 2: larger vocab (exercises the HBM row-DMA gather path: 32-deep ring,
    # unrolled steady-state loop, multi-tile grid, and a ragged last tile).
    B2, T2 = 2, 40
    vocab2, dim2 = 4096, 128
    emb_table2 = jax.random.normal(k_emb2, (vocab2, dim2), dtype=jnp.float32)
    x2 = jax.random.randint(k_ids2, (B2, T2), 0, vocab2, dtype=jnp.int32)

    out2 = jax.block_until_ready(token_embedding(x2, emb_table2, tm=48))
    ref2 = jnp.take(emb_table2, x2, axis=0)
    assert out2.shape == (B2, T2, dim2)
    assert jnp.allclose(out2, ref2), "DMA gather path mismatch vs. reference lookup"

    print("KERNEL_OK")
</pallas_src>

<mosaic_0001>
module attributes {stable_mosaic.version = 11 : i64} {
  func.func @_embed_onehot_kernel(%arg0: i32, %arg1: memref<16x1xi32, #tpu.memory_space<vmem>>, %arg2: memref<64x32xf32, #tpu.memory_space<vmem>>, %arg3: memref<16x32xf32, #tpu.memory_space<vmem>>) attributes {dimension_semantics = [#tpu.dimension_semantics<parallel>], iteration_bounds = array<i64: 1>, scalar_prefetch = 0 : i64, scratch_operands = 0 : i64, tpu.core_type = #tpu.core_type<tc>, window_params = [{transform_indices = @transform_0, window_bounds = array<i64: 16, 1>}, {pipeline_mode = #tpu.pipeline_mode<synchronous>, transform_indices = @transform_1, window_bounds = array<i64: 64, 32>}, {transform_indices = @transform_2, window_bounds = array<i64: 16, 32>}]} {
    %c0 = arith.constant 0 : index
    %c0_0 = arith.constant 0 : index
    %0 = vector.load %arg1[%c0, %c0_0] : memref<16x1xi32, #tpu.memory_space<vmem>>, vector<16x1xi32>
    %1 = tpu.iota {dimensions = array<i32: 1>} : vector<16x64xi32>
    %2 = vector.broadcast %0 : vector<16x1xi32> to vector<16x64xi32>
    %3 = arith.cmpi eq, %2, %1 : vector<16x64xi32>
    %4 = arith.extui %3 : vector<16x64xi1> to vector<16x64xi32>
    %5 = arith.sitofp %4 : vector<16x64xi32> to vector<16x64xf32>
    %c0_1 = arith.constant 0 : index
    %c0_2 = arith.constant 0 : index
    %6 = vector.load %arg2[%c0_1, %c0_2] : memref<64x32xf32, #tpu.memory_space<vmem>>, vector<64x32xf32>
    %cst = arith.constant dense<0.000000e+00> : vector<16x32xf32>
    %7 = tpu.matmul %5, %6, %cst {dimension_numbers = #tpu.dot_dimension_numbers<[1], [0], [0], [1], [0, 0, 1, 1], [], []>} : vector<16x64xf32>, vector<64x32xf32>, vector<16x32xf32> -> vector<16x32xf32>
    %c0_3 = arith.constant 0 : index
    %c0_4 = arith.constant 0 : index
    %8 = vector.load %arg3[%c0_3, %c0_4] : memref<16x32xf32, #tpu.memory_space<vmem>>, vector<16x32xf32>
    tpu.vector_store %arg3[%c0_3, %c0_4], %7 {strides = array<i32>} : memref<16x32xf32, #tpu.memory_space<vmem>>, vector<16x32xf32>,
    return
  }
  func.func @transform_0(%arg0: i32) -> (i32, i32) {
    %c0_i32 = arith.constant 0 : i32
    %c0_i32_0 = arith.constant 0 : i32
    return %arg0, %c0_i32 : i32, i32
  }
  func.func @transform_1(%arg0: i32) -> (i32, i32) {
    %c0_i32 = arith.constant 0 : i32
    %c0_i32_0 = arith.constant 0 : i32
    %c0_i32_1 = arith.constant 0 : i32
    return %c0_i32, %c0_i32_0 : i32, i32
  }
  func.func @transform_2(%arg0: i32) -> (i32, i32) {
    %c0_i32 = arith.constant 0 : i32
    %c0_i32_0 = arith.constant 0 : i32
    return %arg0, %c0_i32 : i32, i32
  }
}

</mosaic_0001>

<llo_original>
// kernel: tpu_custom_call.1
$region0: #{tpu_custom_call.1}
  #allocation0 [shape = 'u32[]', space=smem, size = 0x4, offset = 0x4, fixed_abs, tag = 'smem constant byte address 0x4 - core index']
  #allocation1 [shape = 'u32[144,128]{1,0:T(1,128)}', space=vmem, size = 0x12000, scoped, tag = 'internal scratch']
  %s0 = inlined_call_operand.vmem [shape: s32[16,1], index: 0, kind: input, shape index: {}]
  %s1 = inlined_call_operand.vmem [shape: f32[64,32], index: 1, kind: input, shape index: {}]
  %s2 = inlined_call_operand.hbm [shape: f32[16,32], index: 2, kind: output, shape index: {}]
  %s3 = sld [smem:[#allocation0]]
  $region18: #{tpu_custom_call.1} parent=0
    _
  %s5 = ssub.s32 1, %s3
  %s6 = scalar_select 0, %s5, %s3
  $region1: #{tpu_custom_call.1} parent=0
    #allocation2 [shape = 'u8[8192]{0}', space=vmem, size = 0x2000, scoped, tag = 'output window, operand 0, single buffered']
    #allocation3 [shape = 's32[1]{0}', space=sflag, size = 0x4, scoped, tag = 'scoped memory for tpu_custom_call.1']
    %7 = vsyncpa [#allocation3], 0
    // Predicated region
    $region2: #{tpu_custom_call.1} parent=1 // pred_check
      _
    $region3: #{tpu_custom_call.1} parent=1 // pred_check_branch
      %9 = sbr.rel (0) target = $region5
    $region4: #{tpu_custom_call.1} parent=1 // pred_region
      _
    $region5: #{tpu_custom_call.1} parent=1 // pred_fallthru
      _
    // Predicated region
    $region6: #{tpu_custom_call.1} parent=1 // pred_check
      _
    $region7: #{tpu_custom_call.1} parent=1 // pred_check_branch
      %11 = sbr.rel (0) target = $region9
    $region8: #{tpu_custom_call.1} parent=1 // pred_region
      _
    $region9: #{tpu_custom_call.1} parent=1 // pred_fallthru
      _
    %v12 = vld [vmem:[%s0] sm:$0xff]
    %v13 = vld [vmem:[%s0 + $0x8] sm:$0xff]
    %v14 = vlaneseq
    %v15 = vand.u32 %v14, 127
    %16 = vset.pattern.permute.xlu0 0
    %17 = vperm.xlu0 %16, %v12
    %v18 = vpop.permute.xlu0 %17
    %19 = vset.pattern.permute.xlu0 0
    %20 = vperm.xlu0 %19, %v13
    %v21 = vpop.permute.xlu0 %20
    %vm22 = vcmp.eq.s32.totalorder %v18, %v15
    %vm23 = vcmp.eq.s32.totalorder %v21, %v15
    %v24 = vsel %vm22, 1, 0
    %v25 = vsel %vm23, 1, 0
    %v26 = vcvt.s32.f32 %v24
    %v27 = vcvt.s32.f32 %v25
    %v28 = vld [vmem:[%s1] sm:$0xff]
    %v29 = vld [vmem:[%s1 + $0x8] sm:$0xff]
    %v30 = vld [vmem:[%s1 + $0x10] sm:$0xff]
    %v31 = vld [vmem:[%s1 + $0x18] sm:$0xff]
    %v32 = vld [vmem:[%s1 + $0x20] sm:$0xff]
    %v33 = vld [vmem:[%s1 + $0x28] sm:$0xff]
    %v34 = vld [vmem:[%s1 + $0x30] sm:$0xff]
    %v35 = vld [vmem:[%s1 + $0x38] sm:$0xff]
    %vm36 = vcmask 523264
    %v38 = vsel %vm36, %v26, 0
    %v41 = vsel %vm36, %v27, 0
    %43 = vmatprep.subr.mxu0 0.0
    %44 = vmatpush1.msra.mxu0 0.0
    %45 = vmatprep.subr.mxu0 0.0
    %46 = vmatpush1.msra.mxu0 0.0
    %47 = vmatprep.subr.mxu0 0.0
    %48 = vmatpush1.msra.mxu0 0.0
    %49 = vmatprep.subr.mxu0 0.0
    %50 = vmatpush1.msra.mxu0 0.0
    %51 = vmatprep.subr.mxu0 0.0
    %52 = vmatpush1.msra.mxu0 0.0
    %53 = vmatprep.subr.mxu0 0.0
    %54 = vmatpush1.msra.mxu0 0.0
    %55 = vmatprep.subr.mxu0 0.0
    %56 = vmatpush1.msra.mxu0 0.0
    %57 = vmatprep.subr.mxu0 0.0
    %58 = vmatpush1.msra.mxu0 0.0
    %59 = vmatprep.subr.mxu0 0.0
    %60 = vmatpush1.msra.mxu0 %v35
    %61 = vmatprep.subr.mxu0 0.0
    %62 = vmatpush1.msra.mxu0 %v34
    %63 = vmatprep.subr.mxu0 0.0
    %64 = vmatpush1.msra.mxu0 %v33
    %65 = vmatprep.subr.mxu0 0.0
    %66 = vmatpush1.msra.mxu0 %v32
    %67 = vmatprep.subr.mxu0 0.0
    %68 = vmatpush1.msra.mxu0 %v31
    %69 = vmatprep.subr.mxu0 0.0
    %70 = vmatpush1.msra.mxu0 %v30
    %71 = vmatprep.subr.mxu0 0.0
    %72 = vmatpush1.msra.mxu0 %v29
    %73 = vmatprep.subr.mxu0 0.0
    %74 = vmatpush1.msra.mxu0 %v28
    %75 = vmatprep.subr.mxu0 0.0
    %76 = vmatpush2.msra.mxu0 0.0
    %77 = vmatprep.subr.mxu0 0.0
    %78 = vmatpush2.msra.mxu0 0.0
    %79 = vmatprep.subr.mxu0 0.0
    %80 = vmatpush2.msra.mxu0 0.0
    %81 = vmatprep.subr.mxu0 0.0
    %82 = vmatpush2.msra.mxu0 0.0
    %83 = vmatprep.subr.mxu0 0.0
    %84 = vmatpush2.msra.mxu0 0.0
    %85 = vmatprep.subr.mxu0 0.0
    %86 = vmatpush2.msra.mxu0 0.0
    %87 = vmatprep.subr.mxu0 0.0
    %88 = vmatpush2.msra.mxu0 0.0
    %89 = vmatprep.subr.mxu0 0.0
    %90 = vmatpush2.msra.mxu0 0.0
    %91 = vmatprep.subr.mxu0 0.0
    %92 = vmatpush2.msra.mxu0 0.0
    %93 = vmatprep.subr.mxu0 0.0
    %94 = vmatpush2.msra.mxu0 0.0
    %95 = vmatprep.subr.mxu0 0.0
    %96 = vmatpush2.msra.mxu0 0.0
    %97 = vmatprep.subr.mxu0 0.0
    %98 = vmatpush2.msra.mxu0 0.0
    %99 = vmatprep.subr.mxu0 0.0
    %100 = vmatpush2.msra.mxu0 0.0
    %101 = vmatprep.subr.mxu0 0.0
    %102 = vmatpush2.msra.mxu0 0.0
    %103 = vmatprep.subr.mxu0 0.0
    %104 = vmatpush2.msra.mxu0 0.0
    %105 = vmatprep.subr.mxu0 0.0
    %106 = vmatpush2.msra.mxu0 0.0
    %107 = vmatprep.mubr.f32.mxu0 0.0
    %108 = vmatmul.mubr.f32.gmra.mxu0 %v38
    %v109 = vpop.f32.mrf.mxu0
    %v110 = vadd.f32 0.0, %v109
    %v111 = vpop.f32.mrf.mxu0
    %112 = vmatprep.mubr.f32.mxu0 0.0
    %113 = vmatmul.mubr.f32.gmra.mxu0 %v41
    %v114 = vpop.f32.mrf.mxu0
    %v115 = vadd.f32 0.0, %v114
    %v116 = vpop.f32.mrf.mxu0
    %117 = vdwg.mxu0
    %vm118 = vcmask 261120
    %119 = vst.msk [vmem:[#allocation2] sm:$0xff] %vm118, %v110
    %120 = vst.msk [vmem:[#allocation2 + $0x8] sm:$0xff] %vm118, %v115
    // Predicated region
    $region10: #{tpu_custom_call.1} parent=1 // pred_check
      _
    $region11: #{tpu_custom_call.1} parent=1 // pred_check_branch
      %122 = sbr.rel (0) target = $region13
    $region12: #{tpu_custom_call.1} parent=1 // pred_region
      %s124 = ssub.s32 256, 256
      %125 = vsyncadd [#allocation3], %s124
      %s126 = sshll.u32 [#allocation2], 4
      %s127 = int_to_ptr.vmem [resolvable:$true] %s126
      %132 = dma.vmem_to_hbm [thread:$0]  %s127, 256, %s2, [#allocation3], 128, 128, 8
    $region13: #{tpu_custom_call.1} parent=1 // pred_fallthru
      _
    // Predicated region
    $region14: #{tpu_custom_call.1} parent=1 // pred_check
      _
    $region15: #{tpu_custom_call.1} parent=1 // pred_check_branch
      %134 = sbr.rel (0) target = $region17
    $region16: #{tpu_custom_call.1} parent=1 // pred_region
      %135 = dma.done [#allocation3], 256
    $region17: #{tpu_custom_call.1} parent=1 // pred_fallthru
      _
    %136 = vsyncpa [#allocation3], 1

</llo_original>
